<compile_context>
chip_gen: v5e
topology: v5e:2x2
jax: 0.10.0
libtpu: 0.0.40
codegen_flags: <defaults>
</compile_context>

<pallas_src>
import functools

import jax
import jax.numpy as jnp
import numpy as np
from jax.experimental import pallas as pl
from jax.experimental.pallas import tpu as pltpu


def _round_up(x, m):
    return ((x + m - 1) // m) * m


def _time_encode_kernel(t_ref, w_ref, b_ref, o_ref, *, P, D, DO):
    # t_ref: (TM, P) packed timestamps; w_ref/b_ref: (1, DO) lane-tiled params;
    # o_ref: (TM, DO) lane-dense output slab.
    t = t_ref[...]
    TM = t.shape[0]
    if P == 1:
        t_wide = jnp.broadcast_to(t, (TM, DO))            # lane broadcast
    else:
        # Expand each packed timestamp column across its D output lanes, then
        # assemble the full 128-lane argument once.  All arithmetic below
        # (mul, add, cos) runs at full vreg lane width; this stays exact f32.
        t_wide = jnp.concatenate(
            [jnp.broadcast_to(t[:, j:j + 1], (TM, D)) for j in range(P)],
            axis=-1,
        )
    o_ref[...] = jnp.cos(t_wide * w_ref[...] + b_ref[...]).astype(o_ref.dtype)


def time_encode(t, w, bias, *, block_rows=8192, out_dtype=jnp.float32):
    """t: (B, S); w: (D,); bias: (D,)  ->  (B, S, D) = cos(t[..., None]*w + bias)."""
    B, S = t.shape
    D = int(w.shape[0])
    M = B * S

    # ---- choose lane layout ------------------------------------------------
    if D < 128 and 128 % D == 0:
        # Pack P timestamps per 128-lane output row.
        P = 128 // D
        DO = 128
        w_row = jnp.tile(w.reshape(1, D).astype(jnp.float32), (1, P))
        b_row = jnp.tile(bias.reshape(1, D).astype(jnp.float32), (1, P))
    else:
        # One timestamp per row; pad D up to a multiple of 128 so stores stay
        # full lane width (padded lanes are sliced off in the wrapper).
        P = 1
        DO = _round_up(D, 128)
        w_row = jnp.zeros((1, DO), jnp.float32).at[0, :D].set(w.astype(jnp.float32))
        b_row = jnp.zeros((1, DO), jnp.float32).at[0, :D].set(bias.astype(jnp.float32))

    # ---- tile sizing -------------------------------------------------------
    align = 16 if out_dtype == jnp.bfloat16 else 8
    out_itemsize = jnp.dtype(out_dtype).itemsize

    # Cap the tile so one output buffer stays <= ~4 MiB (double-buffered 8 MiB:
    # safe under v5e's 16 MiB and v7x's 32 MiB scoped VMEM defaults).
    vmem_budget = 4 * 1024 * 1024
    max_rows_by_vmem = max(align, (vmem_budget // (DO * out_itemsize)) // align * align)
    block_rows_eff = max(align, min(block_rows, max_rows_by_vmem))

    rows = pl.cdiv(M, P)                      # output slab rows needed
    n_tiles = max(1, pl.cdiv(rows, block_rows_eff))
    if rows >= 2048:                          # enough work: give v7x's 2 TCs tiles
        n_tiles = max(n_tiles, 2)
    TM = _round_up(pl.cdiv(rows, n_tiles), align)   # equalized tile rows
    rows_pad = n_tiles * TM
    M_pad = rows_pad * P

    t_flat = t.reshape(M).astype(jnp.float32)
    if M_pad != M:
        t_flat = jnp.pad(t_flat, (0, M_pad - M))
    t2 = t_flat.reshape(rows_pad, P)

    # ---- pallas call -------------------------------------------------------
    out = pl.pallas_call(
        functools.partial(_time_encode_kernel, P=P, D=D, DO=DO),
        out_shape=jax.ShapeDtypeStruct((rows_pad, DO), out_dtype),
        grid_spec=pltpu.PrefetchScalarGridSpec(
            num_scalar_prefetch=0,
            grid=(n_tiles,),
            in_specs=[
                pl.BlockSpec((TM, P), lambda i: (i, 0)),    # packed timestamps
                pl.BlockSpec((1, DO), lambda i: (0, 0)),    # lane-tiled weights (resident)
                pl.BlockSpec((1, DO), lambda i: (0, 0)),    # lane-tiled bias (resident)
            ],
            out_specs=pl.BlockSpec((TM, DO), lambda i: (i, 0)),
        ),
        compiler_params=pltpu.CompilerParams(
            dimension_semantics=("parallel",),  # independent tiles -> 2-TC split on v7x
        ),
    )(t2, w_row, b_row)

    # ---- unpack / unpad ----------------------------------------------------
    if P > 1:
        out = out.reshape(rows_pad * P, D)[:M]    # row-major unpack, drop padding
    else:
        out = out[:M, :D]                          # drop row + lane padding
    return out.reshape(B, S, D)


def init_time_encode_params(dimension):
    # Deterministic init mirroring the PyTorch __init__.
    w = (1.0 / 10.0 ** np.linspace(0, 9, dimension)).astype(np.float32)
    bias = np.zeros((dimension,), dtype=np.float32)
    return jnp.asarray(w), jnp.asarray(bias)


if __name__ == "__main__":
    B, S, D = 2, 8, 32  # batch, seq, time-encoding dimension

    key = jax.random.PRNGKey(0)
    # timestamps: positive floats, as TGN would feed in
    t = jax.random.uniform(key, (B, S), dtype=jnp.float32, minval=0.0, maxval=1000.0)

    # Packed path (D = 32 divides 128).
    w, bias = init_time_encode_params(D)
    out = jax.block_until_ready(time_encode(t, w, bias))
    ref = jnp.cos(t[:, :, None] * w[None, None, :] + bias[None, None, :])
    assert out.shape == (B, S, D)
    np.testing.assert_allclose(np.asarray(out), np.asarray(ref), rtol=1e-5, atol=1e-5)

    # Lane-padded path (D = 200 is neither a divisor nor a multiple of 128).
    D2 = 200
    w2, bias2 = init_time_encode_params(D2)
    out2 = jax.block_until_ready(time_encode(t, w2, bias2))
    ref2 = jnp.cos(t[:, :, None] * w2[None, None, :] + bias2[None, None, :])
    assert out2.shape == (B, S, D2)
    np.testing.assert_allclose(np.asarray(out2), np.asarray(ref2), rtol=1e-5, atol=1e-5)

    print("KERNEL_OK")
</pallas_src>

<mosaic_0001>
module attributes {stable_mosaic.version = 11 : i64} {
  func.func @_time_encode_kernel(%arg0: i32, %arg1: memref<8x4xf32, #tpu.memory_space<vmem>>, %arg2: memref<1x128xf32, #tpu.memory_space<vmem>>, %arg3: memref<1x128xf32, #tpu.memory_space<vmem>>, %arg4: memref<8x128xf32, #tpu.memory_space<vmem>>) attributes {dimension_semantics = [#tpu.dimension_semantics<parallel>], iteration_bounds = array<i64: 1>, scalar_prefetch = 0 : i64, scratch_operands = 0 : i64, tpu.core_type = #tpu.core_type<tc>, window_params = [{transform_indices = @transform_0, window_bounds = array<i64: 8, 4>}, {pipeline_mode = #tpu.pipeline_mode<synchronous>, transform_indices = @transform_1, window_bounds = array<i64: 1, 128>}, {pipeline_mode = #tpu.pipeline_mode<synchronous>, transform_indices = @transform_2, window_bounds = array<i64: 1, 128>}, {transform_indices = @transform_3, window_bounds = array<i64: 8, 128>}]} {
    %c0 = arith.constant 0 : index
    %c0_0 = arith.constant 0 : index
    %0 = vector.load %arg1[%c0, %c0_0] : memref<8x4xf32, #tpu.memory_space<vmem>>, vector<8x4xf32>
    %1 = vector.extract_strided_slice %0 {offsets = [0, 0], sizes = [8, 1], strides = [1, 1]} : vector<8x4xf32> to vector<8x1xf32>
    %2 = vector.shape_cast %1 : vector<8x1xf32> to vector<8x1xf32>
    %3 = vector.broadcast %2 : vector<8x1xf32> to vector<8x32xf32>
    %4 = vector.extract_strided_slice %0 {offsets = [0, 1], sizes = [8, 1], strides = [1, 1]} : vector<8x4xf32> to vector<8x1xf32>
    %5 = vector.shape_cast %4 : vector<8x1xf32> to vector<8x1xf32>
    %6 = vector.broadcast %5 : vector<8x1xf32> to vector<8x32xf32>
    %7 = vector.extract_strided_slice %0 {offsets = [0, 2], sizes = [8, 1], strides = [1, 1]} : vector<8x4xf32> to vector<8x1xf32>
    %8 = vector.shape_cast %7 : vector<8x1xf32> to vector<8x1xf32>
    %9 = vector.broadcast %8 : vector<8x1xf32> to vector<8x32xf32>
    %10 = vector.extract_strided_slice %0 {offsets = [0, 3], sizes = [8, 1], strides = [1, 1]} : vector<8x4xf32> to vector<8x1xf32>
    %11 = vector.shape_cast %10 : vector<8x1xf32> to vector<8x1xf32>
    %12 = vector.broadcast %11 : vector<8x1xf32> to vector<8x32xf32>
    %13 = tpu.concatenate %3, %6, %9, %12 in 1 : vector<8x32xf32>, vector<8x32xf32>, vector<8x32xf32>, vector<8x32xf32> -> vector<8x128xf32>
    %c0_1 = arith.constant 0 : index
    %c0_2 = arith.constant 0 : index
    %14 = vector.load %arg2[%c0_1, %c0_2] : memref<1x128xf32, #tpu.memory_space<vmem>>, vector<1x128xf32>
    %15 = vector.broadcast %14 : vector<1x128xf32> to vector<8x128xf32>
    %16 = arith.mulf %13, %15 : vector<8x128xf32>
    %c0_3 = arith.constant 0 : index
    %c0_4 = arith.constant 0 : index
    %17 = vector.load %arg3[%c0_3, %c0_4] : memref<1x128xf32, #tpu.memory_space<vmem>>, vector<1x128xf32>
    %18 = vector.broadcast %17 : vector<1x128xf32> to vector<8x128xf32>
    %19 = arith.addf %16, %18 : vector<8x128xf32>
    %20 = math.cos %19 : vector<8x128xf32>
    %c0_5 = arith.constant 0 : index
    %c0_6 = arith.constant 0 : index
    %21 = vector.load %arg4[%c0_5, %c0_6] : memref<8x128xf32, #tpu.memory_space<vmem>>, vector<8x128xf32>
    tpu.vector_store %arg4[%c0_5, %c0_6], %20 {strides = array<i32>} : memref<8x128xf32, #tpu.memory_space<vmem>>, vector<8x128xf32>,
    return
  }
  func.func @transform_0(%arg0: i32) -> (i32, i32) {
    %c0_i32 = arith.constant 0 : i32
    %c0_i32_0 = arith.constant 0 : i32
    return %arg0, %c0_i32 : i32, i32
  }
  func.func @transform_1(%arg0: i32) -> (i32, i32) {
    %c0_i32 = arith.constant 0 : i32
    %c0_i32_0 = arith.constant 0 : i32
    %c0_i32_1 = arith.constant 0 : i32
    return %c0_i32, %c0_i32_0 : i32, i32
  }
  func.func @transform_2(%arg0: i32) -> (i32, i32) {
    %c0_i32 = arith.constant 0 : i32
    %c0_i32_0 = arith.constant 0 : i32
    %c0_i32_1 = arith.constant 0 : i32
    return %c0_i32, %c0_i32_0 : i32, i32
  }
  func.func @transform_3(%arg0: i32) -> (i32, i32) {
    %c0_i32 = arith.constant 0 : i32
    %c0_i32_0 = arith.constant 0 : i32
    return %arg0, %c0_i32 : i32, i32
  }
}

</mosaic_0001>

<llo_original>
// kernel: tpu_custom_call.1
$region0: #{tpu_custom_call.1}
  #allocation0 [shape = 'u32[]', space=smem, size = 0x4, offset = 0x4, fixed_abs, tag = 'smem constant byte address 0x4 - core index']
  #allocation1 [shape = 'u32[72,128]{1,0:T(1,128)}', space=vmem, size = 0x9000, scoped, tag = 'internal scratch']
  %s0 = inlined_call_operand.vmem [shape: f32[8,4], index: 0, kind: input, shape index: {}]
  %s1 = inlined_call_operand.vmem [shape: f32[1,128], index: 1, kind: input, shape index: {}]
  %s2 = inlined_call_operand.vmem [shape: f32[1,128], index: 2, kind: input, shape index: {}]
  %s3 = inlined_call_operand.hbm [shape: f32[8,128], index: 3, kind: output, shape index: {}]
  %s4 = sld [smem:[#allocation0]]
  $region22: #{tpu_custom_call.1} parent=0
    _
  %s6 = ssub.s32 1, %s4
  %s7 = scalar_select 0, %s6, %s4
  $region1: #{tpu_custom_call.1} parent=0
    #allocation2 [shape = 'u8[4096]{0}', space=vmem, size = 0x1000, scoped, tag = 'output window, operand 0, single buffered']
    #allocation3 [shape = 's32[1]{0}', space=sflag, size = 0x4, scoped, tag = 'scoped memory for tpu_custom_call.1']
    %8 = vsyncpa [#allocation3], 0
    // Predicated region
    $region2: #{tpu_custom_call.1} parent=1 // pred_check
      _
    $region3: #{tpu_custom_call.1} parent=1 // pred_check_branch
      %10 = sbr.rel (0) target = $region5
    $region4: #{tpu_custom_call.1} parent=1 // pred_region
      _
    $region5: #{tpu_custom_call.1} parent=1 // pred_fallthru
      _
    // Predicated region
    $region6: #{tpu_custom_call.1} parent=1 // pred_check
      _
    $region7: #{tpu_custom_call.1} parent=1 // pred_check_branch
      %12 = sbr.rel (0) target = $region9
    $region8: #{tpu_custom_call.1} parent=1 // pred_region
      _
    $region9: #{tpu_custom_call.1} parent=1 // pred_fallthru
      _
    // Predicated region
    $region10: #{tpu_custom_call.1} parent=1 // pred_check
      _
    $region11: #{tpu_custom_call.1} parent=1 // pred_check_branch
      %14 = sbr.rel (0) target = $region13
    $region12: #{tpu_custom_call.1} parent=1 // pred_region
      _
    $region13: #{tpu_custom_call.1} parent=1 // pred_fallthru
      _
    %v15 = vld [vmem:[%s0] sm:$0xff]
    %17 = vset.pattern.permute.xlu0 0
    %18 = vperm.xlu0 %17, %v15
    %v19 = vpop.permute.xlu0 %18
    %21 = vset.pattern.permute.xlu0 1
    %22 = vperm.xlu0 %21, %v15
    %v23 = vpop.permute.xlu0 %22
    %25 = vset.pattern.permute.xlu0 2
    %26 = vperm.xlu0 %25, %v15
    %v27 = vpop.permute.xlu0 %26
    %29 = vset.pattern.permute.xlu0 3
    %30 = vperm.xlu0 %29, %v15
    %v31 = vpop.permute.xlu0 %30
    %vm33 = vcmask 261120
    %v34 = vsel %vm33, %v19, %v23
    %vm35 = vcmask 523264
    %v36 = vsel %vm35, %v34, %v27
    %vm37 = vcmask 785408
    %v38 = vsel %vm37, %v36, %v31
    %v39 = vld [vmem:[%s1] sm:$0x1]
    %v41 = vperm.slane %v39, 0
    %v43 = vmul.f32 %v38, %v41
    %v44 = vld [vmem:[%s2] sm:$0x1]
    %v46 = vperm.slane %v44, 0
    %v48 = vadd.f32 %v43, %v46
    %v49 = vand.u32 2147483647, %v48
    %vm50 = vcmp.le.f32.partialorder %v49, 0.7853982
    %vm51 = vcmp.lt.s32.totalorder %v48, 0
    %v52 = vand.u32 %v48, 2139095040
    %v53 = vshrl.u32 %v52, 23
    %v54 = vsub.s32 %v53, 127
    %v55 = vand.u32 2147483647, %v48
    %v56 = vand.u32 %v55, 8388607
    %v57 = vor.u32 %v56, 8388608
    %v58 = vsub.s32 0, %v57
    %v59 = vadd.s32 %v54, 1
    %vm60 = vcmp.gt.s32.totalorder %v59, 0
    %v61 = vsel %vm60, %v59, 0
    %v62 = vshrl.u32 %v61, 5
    %v63 = vand.u32 %v61, 31
    %v64 = vsub.s32 32, %v63
    %v65 = vshrl.u32 683565275, %v64
    %v66 = vshll.u32 683565275, %v63
    %v67 = vshrl.u32 2475754826, %v64
    %v68 = vor.u32 %v66, %v67
    %v69 = vshll.u32 2475754826, %v63
    %v70 = vshrl.u32 2131351028, %v64
    %v71 = vor.u32 %v69, %v70
    %v72 = vshll.u32 2131351028, %v63
    %v73 = vshrl.u32 2102212464, %v64
    %v74 = vor.u32 %v72, %v73
    %v75 = vshll.u32 2102212464, %v63
    %v76 = vshrl.u32 920167782, %v64
    %v77 = vor.u32 %v75, %v76
    %v78 = vshll.u32 920167782, %v63
    %v79 = vshrl.u32 1326507024, %v64
    %v80 = vor.u32 %v78, %v79
    %vm81 = vcmp.lt.s32.totalorder %v62, 1
    %vm82 = vcmp.lt.s32.totalorder %v62, 2
    %vm83 = vcmp.lt.s32.totalorder %v62, 3
    %vm84 = vcmp.lt.s32.totalorder %v62, 4
    %v85 = vsel %vm81, %v65, %v68
    %v86 = vsel %vm84, %v74, 2102212464
    %v87 = vsel %vm83, %v71, %v86
    %v88 = vsel %vm82, %v85, %v87
    %v89 = vsel %vm81, %v68, %v71
    %v90 = vsel %vm84, %v77, 920167782
    %v91 = vsel %vm83, %v74, %v90
    %v92 = vsel %vm82, %v89, %v91
    %v93 = vsel %vm81, %v71, %v74
    %v94 = vsel %vm84, %v80, 1326507024
    %v95 = vsel %vm83, %v77, %v94
    %v96 = vsel %vm82, %v93, %v95
    %v97 = vshll.u32 %v57, 8
    %v98 = vand.u32 %v97, 65535
    %v99 = vshrl.u32 %v97, 16
    %v100 = vand.u32 %v96, 65535
    %v101 = vshrl.u32 %v96, 16
    %v102 = vmul.u32 %v98, %v100
    %v103 = vmul.u32 %v98, %v101
    %v104 = vmul.u32 %v99, %v100
    %v105 = vmul.u32 %v99, %v101
    %v106 = vshll.u32 %v103, 16
    %v107 = vshrl.u32 %v103, 16
    %v108 = vshll.u32 %v104, 16
    %v109 = vshrl.u32 %v104, 16
    %vm110 = vc.u32 %v102, %v106
    %v111 = vsel %vm110, 1, 0
    %v112 = vadd.s32 %v102, %v106
    %v113 = vadd.s32 %v105, %v111
    %vm114 = vc.u32 %v112, %v108
    %v115 = vsel %vm114, 1, 0
    %v116 = vadd.s32 %v112, %v108
    %v117 = vadd.s32 %v113, %v115
    %v118 = vadd.s32 %v117, %v107
    %v119 = vadd.s32 %v118, %v109
    %v120 = vand.u32 %v97, 65535
    %v121 = vshrl.u32 %v97, 16
    %v122 = vand.u32 %v92, 65535
    %v123 = vshrl.u32 %v92, 16
    %v124 = vmul.u32 %v120, %v122
    %v125 = vmul.u32 %v120, %v123
    %v126 = vmul.u32 %v121, %v122
    %v127 = vmul.u32 %v121, %v123
    %v128 = vshll.u32 %v125, 16
    %v129 = vshrl.u32 %v125, 16
    %v130 = vshll.u32 %v126, 16
    %v131 = vshrl.u32 %v126, 16
    %vm132 = vc.u32 %v124, %v128
    %v133 = vsel %vm132, 1, 0
    %v134 = vadd.s32 %v124, %v128
    %v135 = vadd.s32 %v127, %v133
    %vm136 = vc.u32 %v134, %v130
    %v137 = vsel %vm136, 1, 0
    %v138 = vadd.s32 %v134, %v130
    %v139 = vadd.s32 %v135, %v137
    %v140 = vadd.s32 %v139, %v129
    %v141 = vadd.s32 %v140, %v131
    %v142 = vmul.u32 %v97, %v88
    %v143 = vadd.s32 %v119, %v138
    %vm144 = vc.u32 %v119, %v138
    %v145 = vadd.s32 %v141, 1
    %v146 = vsel %vm144, %v145, %v141
    %v147 = vadd.s32 %v142, %v146
    %v148 = vadd.s32 %v147, 536870912
    %v149 = vshrl.u32 %v148, 30
    %v150 = vshll.u32 %v149, 30
    %v151 = vsub.s32 %v147, %v150
    %vm152 = vcmp.lt.s32.totalorder %v151, 0
    %v153 = vsub.s32 0, %v151
    %v154 = vsel %vm152, %v153, %v151
    %v155 = vclz %v154
    %v156 = vsub.s32 %v155, 2
    %vm157 = vcmp.gt.s32.totalorder 0, %v156
    %v158 = vsel %vm157, 0, %v156
    %v159 = vsub.s32 32, %v158
    %v160 = vshll.u32 %v151, %v158
    %v161 = vshrl.u32 %v143, %v159
    %v162 = vor.u32 %v160, %v161
    %v163 = vsub.s32 4294967266, %v158
    %v164 = vadd.s32 %v163, 127
    %v165 = vshll.u32 %v164, 23
    %v166 = vor.u32 4788187, %v165
    %v167 = vand.u32 2147483647, %v166
    %v169 = vcvt.s32.f32 %v162
    %v170 = vmul.f32 %v169, %v167
    %v171 = vxor.u32 %v170, 2147483648
    %v172 = vsel %vm51, %v171, %v170
    %v173 = vsub.s32 4, %v149
    %v174 = vsel %vm51, %v173, %v149
    %v175 = vsel %vm50, %v48, %v172
    %v176 = vsel %vm50, 0, %v174
    %v177 = vmul.f32 %v175, %v175
    %v178 = vmul.f32 %v177, -0.001358992
    %v179 = vadd.f32 %v178, 0.041655596
    %v180 = vmul.f32 %v177, %v179
    %v181 = vadd.f32 %v180, -0.4999988
    %v182 = vmul.f32 %v177, %v181
    %v183 = vadd.f32 1.0, %v182
    %v184 = vmul.f32 %v175, %v175
    %v185 = vmul.f32 %v184, -0.00019511016
    %v186 = vadd.f32 %v185, 0.008332121
    %v187 = vmul.f32 %v184, %v186
    %v188 = vadd.f32 %v187, -0.16666654
    %v189 = vmul.f32 %v184, %v188
    %v190 = vadd.f32 %v189, 1.0
    %v191 = vmul.f32 %v190, %v175
    %vm192 = vweird.f32 %v48
    %v193 = vand.u32 %v176, 3
    %vm194 = vcmp.lt.s32.totalorder %v193, 2
    %vm195 = vcmp.eq.s32.totalorder %v193, 0
    %v196 = vxor.u32 %v191, 2147483648
    %v197 = vsel %vm195, %v183, %v196
    %vm198 = vcmp.eq.s32.totalorder %v193, 2
    %v199 = vxor.u32 %v183, 2147483648
    %v200 = vsel %vm198, %v199, %v191
    %v201 = vsel %vm194, %v197, %v200
    %v202 = vsel %vm192, nan, %v201
    %203 = vst [vmem:[#allocation2] sm:$0xff] %v202
    // Predicated region
    $region14: #{tpu_custom_call.1} parent=1 // pred_check
      _
    $region15: #{tpu_custom_call.1} parent=1 // pred_check_branch
      %205 = sbr.rel (0) target = $region17
    $region16: #{tpu_custom_call.1} parent=1 // pred_region
      %207 = vsyncadd [#allocation3], 0
      %s209 = sshll.u32 [#allocation2], 4
      %s210 = int_to_ptr.vmem [resolvable:$true] %s209
      %s211 = sshll.u32 %s3, 4
      %s212 = int_to_ptr.hbm [resolvable:$true] %s211
      %214 = dma.vmem_to_hbm [thread:$0]  %s210, 128, %s212, [#allocation3]
    $region17: #{tpu_custom_call.1} parent=1 // pred_fallthru
      _
    // Predicated region
    $region18: #{tpu_custom_call.1} parent=1 // pred_check
      _
    $region19: #{tpu_custom_call.1} parent=1 // pred_check_branch
      %216 = sbr.rel (0) target = $region21
    $region20: #{tpu_custom_call.1} parent=1 // pred_region
      %218 = dma.done [#allocation3], 128
    $region21: #{tpu_custom_call.1} parent=1 // pred_fallthru
      _
    %219 = vsyncpa [#allocation3], 1

</llo_original>
